<compile_context>
chip_gen: v5e
topology: v5e:2x2
jax: 0.10.0
libtpu: 0.0.40
codegen_flags: <defaults>
</compile_context>

<pallas_src>
import jax
import jax.numpy as jnp
from jax.experimental import pallas as pl
from jax.experimental.pallas import tpu as pltpu

_LANE = 128


def _round_up(v, m):
    return ((v + m - 1) // m) * m


def _gcn_fused_kernel(x_ref, adj_ref, w1_ref, b1_ref, w2_ref, b2_ref, out_ref):
    # Whole problem resident in VMEM; single invocation (no grid).
    x = x_ref[...]        # (seq, N, D_in)        f32
    adj = adj_ref[...]    # (seq, N, N)           f32
    w1 = w1_ref[...]      # (seq, D_in, Hp)       hidden padded to 128 lanes
    w2 = w2_ref[...]      # (seq, Hp, Op)         output padded to 128 lanes
    b1 = b1_ref[...]      # (1, Hp)
    b2 = b2_ref[...]      # (1, Op)

    # ---- layer 1 (reassociated): h = relu((adj @ x) @ W1) + b1 ----
    ax = jnp.einsum('snm,smd->snd', adj, x,
                    preferred_element_type=jnp.float32)         # (seq, N, D_in)
    h = jnp.einsum('snd,sdh->snh', ax, w1,
                   preferred_element_type=jnp.float32)          # (seq, N, Hp)
    h = jnp.maximum(h, 0.0) + b1[None]                          # relu, then bias

    # ---- layer 2 (original order, already cheap): y = relu(adj @ (h @ W2)) + b2
    hw2 = jnp.einsum('snh,sho->sno', h, w2,
                     preferred_element_type=jnp.float32)        # (seq, N, Op)
    y = jnp.einsum('snm,smo->sno', adj, hw2,
                   preferred_element_type=jnp.float32)          # (seq, N, Op)
    y = jnp.maximum(y, 0.0) + b2[None]

    out_ref[...] = y.astype(out_ref.dtype)                      # full-lane store


def gcn_forward(x, x_adj, w1, b1, w2, b2):
    """Pallas implementation of _GCN.forward((x, x_adj)) -> (out, x_adj)."""
    seq, n, d_in = x.shape
    hidden = w1.shape[-1]
    d_out = w2.shape[-1]

    # Zero-pad feature dims to the 128-lane width (layout plumbing, done in the
    # wrapper).  relu(0) + 0 bias stays 0, so padded columns never contaminate
    # real outputs; padded rows of W2 multiply h's zero columns.
    hp = _round_up(hidden, _LANE)
    op = _round_up(d_out, _LANE)

    w1p = jnp.pad(w1, ((0, 0), (0, 0), (0, hp - hidden)))
    w2p = jnp.pad(w2, ((0, 0), (0, hp - hidden), (0, op - d_out)))
    b1p = jnp.pad(b1, (0, hp - hidden)).reshape(1, hp)
    b2p = jnp.pad(b2, (0, op - d_out)).reshape(1, op)

    vmem = pl.BlockSpec(memory_space=pltpu.MemorySpace.VMEM)
    out_padded = pl.pallas_call(
        _gcn_fused_kernel,
        out_shape=jax.ShapeDtypeStruct((seq, n, op), x.dtype),
        in_specs=[vmem] * 6,
        out_specs=vmem,
    )(x, x_adj, w1p, b1p, w2p, b2p)

    return out_padded[:, :, :d_out], x_adj


def gcn_reference(x, x_adj, w1, b1, w2, b2):
    """Pure-JAX reference matching the torch semantics (dropout as identity)."""
    h = jnp.matmul(x_adj, jnp.matmul(x, w1))
    h = jax.nn.relu(h) + b1
    y = jnp.matmul(x_adj, jnp.matmul(h, w2))
    y = jax.nn.relu(y) + b2
    return y, x_adj


if __name__ == "__main__":
    # Small shapes consistent with the module: seq=2 graphs, N=16 nodes,
    # input_dim=8, hidden_dim=32, output_dim=8.
    seq, n = 2, 16
    input_dim, hidden_dim, output_dim = 8, 32, 8

    key = jax.random.PRNGKey(0)
    kx, ka, kw1, kw2, kb1, kb2 = jax.random.split(key, 6)

    x = jax.random.normal(kx, (seq, n, input_dim), dtype=jnp.float32)
    x_adj = jax.random.normal(ka, (seq, n, n), dtype=jnp.float32)

    # Parameters mirror torch shapes (weight: randn(seq, in, out)).  Biases are
    # zero-initialised in the torch module; use nonzero values here so the
    # bias-add path is actually exercised by the check.
    w1 = jax.random.normal(kw1, (seq, input_dim, hidden_dim), dtype=jnp.float32)
    b1 = 0.1 * jax.random.normal(kb1, (hidden_dim,), dtype=jnp.float32)
    w2 = jax.random.normal(kw2, (seq, hidden_dim, output_dim), dtype=jnp.float32)
    b2 = 0.1 * jax.random.normal(kb2, (output_dim,), dtype=jnp.float32)

    out, adj_out = gcn_forward(x, x_adj, w1, b1, w2, b2)
    out = jax.block_until_ready(out)

    ref_out, _ = gcn_reference(x, x_adj, w1, b1, w2, b2)
    assert out.shape == (seq, n, output_dim)
    # Layer-1 reassociation changes fp rounding slightly; keep tolerance sane.
    assert jnp.allclose(out, ref_out, atol=1e-3, rtol=1e-4)
    assert jnp.array_equal(adj_out, x_adj)

    print("KERNEL_OK")
</pallas_src>

<mosaic_0001>
module attributes {stable_mosaic.version = 11 : i64} {
  func.func @_gcn_fused_kernel(%arg0: memref<2x16x8xf32, #tpu.memory_space<vmem>>, %arg1: memref<2x16x16xf32, #tpu.memory_space<vmem>>, %arg2: memref<2x8x128xf32, #tpu.memory_space<vmem>>, %arg3: memref<1x128xf32, #tpu.memory_space<vmem>>, %arg4: memref<2x128x128xf32, #tpu.memory_space<vmem>>, %arg5: memref<1x128xf32, #tpu.memory_space<vmem>>, %arg6: memref<2x16x128xf32, #tpu.memory_space<vmem>>) attributes {dimension_semantics = [], scalar_prefetch = 0 : i64, scratch_operands = 0 : i64, tpu.core_type = #tpu.core_type<tc>} {
    %c0 = arith.constant 0 : index
    %c0_0 = arith.constant 0 : index
    %c0_1 = arith.constant 0 : index
    %0 = vector.load %arg0[%c0, %c0_0, %c0_1] : memref<2x16x8xf32, #tpu.memory_space<vmem>>, vector<2x16x8xf32>
    %c0_2 = arith.constant 0 : index
    %c0_3 = arith.constant 0 : index
    %c0_4 = arith.constant 0 : index
    %1 = vector.load %arg1[%c0_2, %c0_3, %c0_4] : memref<2x16x16xf32, #tpu.memory_space<vmem>>, vector<2x16x16xf32>
    %c0_5 = arith.constant 0 : index
    %c0_6 = arith.constant 0 : index
    %c0_7 = arith.constant 0 : index
    %2 = vector.load %arg2[%c0_5, %c0_6, %c0_7] : memref<2x8x128xf32, #tpu.memory_space<vmem>>, vector<2x8x128xf32>
    %c0_8 = arith.constant 0 : index
    %c0_9 = arith.constant 0 : index
    %c0_10 = arith.constant 0 : index
    %3 = vector.load %arg4[%c0_8, %c0_9, %c0_10] : memref<2x128x128xf32, #tpu.memory_space<vmem>>, vector<2x128x128xf32>
    %c0_11 = arith.constant 0 : index
    %c0_12 = arith.constant 0 : index
    %4 = vector.load %arg3[%c0_11, %c0_12] : memref<1x128xf32, #tpu.memory_space<vmem>>, vector<1x128xf32>
    %c0_13 = arith.constant 0 : index
    %c0_14 = arith.constant 0 : index
    %5 = vector.load %arg5[%c0_13, %c0_14] : memref<1x128xf32, #tpu.memory_space<vmem>>, vector<1x128xf32>
    "tpu.trace_start"() <{level = 10 : i32, message = "snm,smd->snd"}> : () -> ()
    %cst = arith.constant dense<0.000000e+00> : vector<2x16x8xf32>
    %6 = tpu.matmul %1, %0, %cst {dimension_numbers = #tpu.dot_dimension_numbers<[2], [1], [1], [2], [0, 0, 0, 1, 1, 2], [0], [0]>} : vector<2x16x16xf32>, vector<2x16x8xf32>, vector<2x16x8xf32> -> vector<2x16x8xf32>
    "tpu.trace_stop"() : () -> ()
    "tpu.trace_start"() <{level = 10 : i32, message = "snd,sdh->snh"}> : () -> ()
    %cst_15 = arith.constant dense<0.000000e+00> : vector<2x16x128xf32>
    %7 = tpu.matmul %6, %2, %cst_15 {dimension_numbers = #tpu.dot_dimension_numbers<[2], [1], [1], [2], [0, 0, 0, 1, 1, 2], [0], [0]>} : vector<2x16x8xf32>, vector<2x8x128xf32>, vector<2x16x128xf32> -> vector<2x16x128xf32>
    "tpu.trace_stop"() : () -> ()
    %cst_16 = arith.constant 0.000000e+00 : f32
    %8 = vector.broadcast %cst_16 : f32 to vector<2x16x128xf32>
    %9 = arith.maximumf %7, %8 : vector<2x16x128xf32>
    %10 = vector.shape_cast %4 : vector<1x128xf32> to vector<1x1x128xf32>
    %11 = vector.broadcast %10 : vector<1x1x128xf32> to vector<2x16x128xf32>
    %12 = arith.addf %9, %11 : vector<2x16x128xf32>
    "tpu.trace_start"() <{level = 10 : i32, message = "snh,sho->sno"}> : () -> ()
    %cst_17 = arith.constant dense<0.000000e+00> : vector<2x16x128xf32>
    %13 = tpu.matmul %12, %3, %cst_17 {dimension_numbers = #tpu.dot_dimension_numbers<[2], [1], [1], [2], [0, 0, 0, 1, 1, 2], [0], [0]>} : vector<2x16x128xf32>, vector<2x128x128xf32>, vector<2x16x128xf32> -> vector<2x16x128xf32>
    "tpu.trace_stop"() : () -> ()
    "tpu.trace_start"() <{level = 10 : i32, message = "snm,smo->sno"}> : () -> ()
    %cst_18 = arith.constant dense<0.000000e+00> : vector<2x16x128xf32>
    %14 = tpu.matmul %1, %13, %cst_18 {dimension_numbers = #tpu.dot_dimension_numbers<[2], [1], [1], [2], [0, 0, 0, 1, 1, 2], [0], [0]>} : vector<2x16x16xf32>, vector<2x16x128xf32>, vector<2x16x128xf32> -> vector<2x16x128xf32>
    "tpu.trace_stop"() : () -> ()
    %cst_19 = arith.constant 0.000000e+00 : f32
    %15 = vector.broadcast %cst_19 : f32 to vector<2x16x128xf32>
    %16 = arith.maximumf %14, %15 : vector<2x16x128xf32>
    %17 = vector.shape_cast %5 : vector<1x128xf32> to vector<1x1x128xf32>
    %18 = vector.broadcast %17 : vector<1x1x128xf32> to vector<2x16x128xf32>
    %19 = arith.addf %16, %18 : vector<2x16x128xf32>
    %c0_20 = arith.constant 0 : index
    %c0_21 = arith.constant 0 : index
    %c0_22 = arith.constant 0 : index
    %20 = vector.load %arg6[%c0_20, %c0_21, %c0_22] : memref<2x16x128xf32, #tpu.memory_space<vmem>>, vector<2x16x128xf32>
    tpu.vector_store %arg6[%c0_20, %c0_21, %c0_22], %19 {strides = array<i32>} : memref<2x16x128xf32, #tpu.memory_space<vmem>>, vector<2x16x128xf32>,
    return
  }
}

</mosaic_0001>

<llo_original>
// kernel: tpu_custom_call.1
$region0: #{tpu_custom_call.1}
  #allocation0 [shape = 'u32[]', space=smem, size = 0x4, offset = 0x4, fixed_abs, tag = 'smem constant byte address 0x4 - core index']
  #allocation1 [shape = 'u32[72,128]{1,0:T(1,128)}', space=vmem, size = 0x9000, scoped, tag = 'internal scratch']
  %s0 = inlined_call_operand.vmem [shape: f32[2,16,8], index: 0, kind: input, shape index: {}]
  %s1 = inlined_call_operand.vmem [shape: f32[2,16,16], index: 1, kind: input, shape index: {}]
  %s2 = inlined_call_operand.vmem [shape: f32[2,8,128], index: 2, kind: input, shape index: {}]
  %s3 = inlined_call_operand.vmem [shape: f32[1,128], index: 3, kind: input, shape index: {}]
  %s4 = inlined_call_operand.hbm [shape: f32[2,128,128], index: 4, kind: input, shape index: {}]
  %s5 = inlined_call_operand.vmem [shape: f32[1,128], index: 5, kind: input, shape index: {}]
  %s6 = inlined_call_operand.hbm [shape: f32[2,16,128], index: 6, kind: output, shape index: {}]
  %s7 = sld [smem:[#allocation0]]
  $region38: #{tpu_custom_call.1} parent=0
    _
  %s9 = ssub.s32 1, %s7
  %s10 = scalar_select 0, %s9, %s7
  $region1: #{tpu_custom_call.1} parent=0
    #allocation2 [shape = 'u8[131072]{0}', space=vmem, size = 0x20000, scoped, tag = 'input window, operand 4, single buffered']
    #allocation3 [shape = 's32[1]{0}', space=sflag, size = 0x4, scoped, tag = 'scoped memory for tpu_custom_call.1']
    #allocation4 [shape = 's32[1]{0}', space=sflag, size = 0x4, scoped, tag = 'scoped memory for tpu_custom_call.1']
    #allocation5 [shape = 'u8[16384]{0}', space=vmem, size = 0x4000, scoped, tag = 'output window, operand 0, single buffered']
    %11 = vsyncpa [#allocation3], 0
    %12 = vsyncpa [#allocation4], 0
    // Predicated region
    $region2: #{tpu_custom_call.1} parent=1 // pred_check
      _
    $region3: #{tpu_custom_call.1} parent=1 // pred_check_branch
      %14 = sbr.rel (0) target = $region5
    $region4: #{tpu_custom_call.1} parent=1 // pred_region
      _
    $region5: #{tpu_custom_call.1} parent=1 // pred_fallthru
      _
    // Predicated region
    $region6: #{tpu_custom_call.1} parent=1 // pred_check
      _
    $region7: #{tpu_custom_call.1} parent=1 // pred_check_branch
      %16 = sbr.rel (0) target = $region9
    $region8: #{tpu_custom_call.1} parent=1 // pred_region
      _
    $region9: #{tpu_custom_call.1} parent=1 // pred_fallthru
      _
    // Predicated region
    $region10: #{tpu_custom_call.1} parent=1 // pred_check
      _
    $region11: #{tpu_custom_call.1} parent=1 // pred_check_branch
      %18 = sbr.rel (0) target = $region13
    $region12: #{tpu_custom_call.1} parent=1 // pred_region
      _
    $region13: #{tpu_custom_call.1} parent=1 // pred_fallthru
      _
    // Predicated region
    $region14: #{tpu_custom_call.1} parent=1 // pred_check
      _
    $region15: #{tpu_custom_call.1} parent=1 // pred_check_branch
      %20 = sbr.rel (0) target = $region17
    $region16: #{tpu_custom_call.1} parent=1 // pred_region
      _
    $region17: #{tpu_custom_call.1} parent=1 // pred_fallthru
      _
    // Predicated region
    $region18: #{tpu_custom_call.1} parent=1 // pred_check
      _
    $region19: #{tpu_custom_call.1} parent=1 // pred_check_branch
      %22 = sbr.rel (0) target = $region21
    $region20: #{tpu_custom_call.1} parent=1 // pred_region
      %24 = vsyncadd [#allocation3], 0
      %s25 = sshll.u32 %s4, 4
      %s26 = int_to_ptr.hbm [resolvable:$true] %s25
      %s27 = sshll.u32 [#allocation2], 4
      %s28 = int_to_ptr.vmem [resolvable:$true] %s27
      %33 = dma.hbm_to_vmem [thread:$0]  %s26, 4096, %s28, [#allocation3], 128, 128, 8
    $region21: #{tpu_custom_call.1} parent=1 // pred_fallthru
      _
    // Predicated region
    $region22: #{tpu_custom_call.1} parent=1 // pred_check
      _
    $region23: #{tpu_custom_call.1} parent=1 // pred_check_branch
      %35 = sbr.rel (0) target = $region25
    $region24: #{tpu_custom_call.1} parent=1 // pred_region
      _
    $region25: #{tpu_custom_call.1} parent=1 // pred_fallthru
      _
    // Predicated region
    $region26: #{tpu_custom_call.1} parent=1 // pred_check
      _
    $region27: #{tpu_custom_call.1} parent=1 // pred_check_branch
      %37 = sbr.rel (0) target = $region29
    $region28: #{tpu_custom_call.1} parent=1 // pred_region
      %39 = dma.done [#allocation3], 4096
    $region29: #{tpu_custom_call.1} parent=1 // pred_fallthru
      _
    %v40 = vld [vmem:[%s0] sm:$0xff]
    %v41 = vld [vmem:[%s0 + $0x8] sm:$0xff]
    %v42 = vld [vmem:[%s0 + $0x10] sm:$0xff]
    %v43 = vld [vmem:[%s0 + $0x18] sm:$0xff]
    %v44 = vld [vmem:[%s1] sm:$0xff]
    %v45 = vld [vmem:[%s1 + $0x8] sm:$0xff]
    %v46 = vld [vmem:[%s1 + $0x10] sm:$0xff]
    %v47 = vld [vmem:[%s1 + $0x18] sm:$0xff]
    %v48 = vld [vmem:[%s2] sm:$0xff]
    %v49 = vld [vmem:[%s2 + $0x8] sm:$0xff]
    %v50 = vld [vmem:[#allocation2] sm:$0xff]
    %v51 = vld [vmem:[#allocation2 + $0x8] sm:$0xff]
    %v52 = vld [vmem:[#allocation2 + $0x10] sm:$0xff]
    %v53 = vld [vmem:[#allocation2 + $0x18] sm:$0xff]
    %v54 = vld [vmem:[#allocation2 + $0x20] sm:$0xff]
    %v55 = vld [vmem:[#allocation2 + $0x28] sm:$0xff]
    %v56 = vld [vmem:[#allocation2 + $0x30] sm:$0xff]
    %v57 = vld [vmem:[#allocation2 + $0x38] sm:$0xff]
    %v58 = vld [vmem:[#allocation2 + $0x40] sm:$0xff]
    %v59 = vld [vmem:[#allocation2 + $0x48] sm:$0xff]
    %v60 = vld [vmem:[#allocation2 + $0x50] sm:$0xff]
    %v61 = vld [vmem:[#allocation2 + $0x58] sm:$0xff]
    %v62 = vld [vmem:[#allocation2 + $0x60] sm:$0xff]
    %v63 = vld [vmem:[#allocation2 + $0x68] sm:$0xff]
    %v64 = vld [vmem:[#allocation2 + $0x70] sm:$0xff]
    %v65 = vld [vmem:[#allocation2 + $0x78] sm:$0xff]
    %v66 = vld [vmem:[#allocation2 + $0x80] sm:$0xff]
    %v67 = vld [vmem:[#allocation2 + $0x88] sm:$0xff]
    %v68 = vld [vmem:[#allocation2 + $0x90] sm:$0xff]
    %v69 = vld [vmem:[#allocation2 + $0x98] sm:$0xff]
    %v70 = vld [vmem:[#allocation2 + $0xa0] sm:$0xff]
    %v71 = vld [vmem:[#allocation2 + $0xa8] sm:$0xff]
    %v72 = vld [vmem:[#allocation2 + $0xb0] sm:$0xff]
    %v73 = vld [vmem:[#allocation2 + $0xb8] sm:$0xff]
    %v74 = vld [vmem:[#allocation2 + $0xc0] sm:$0xff]
    %v75 = vld [vmem:[#allocation2 + $0xc8] sm:$0xff]
    %v76 = vld [vmem:[#allocation2 + $0xd0] sm:$0xff]
    %v77 = vld [vmem:[#allocation2 + $0xd8] sm:$0xff]
    %v78 = vld [vmem:[#allocation2 + $0xe0] sm:$0xff]
    %v79 = vld [vmem:[#allocation2 + $0xe8] sm:$0xff]
    %v80 = vld [vmem:[#allocation2 + $0xf0] sm:$0xff]
    %v81 = vld [vmem:[#allocation2 + $0xf8] sm:$0xff]
    %v82 = vld [vmem:[%s3] sm:$0x1]
    %v83 = vld [vmem:[%s5] sm:$0x1]
    %vm84 = vcmask 130048
    %v86 = vsel %vm84, %v44, 0
    %v89 = vsel %vm84, %v45, 0
    %91 = vmatpush.msra.mxu0 0.0
    %92 = vmatpush.msra.mxu0 0.0
    %93 = vmatpush.msra.mxu0 0.0
    %94 = vmatpush.msra.mxu0 0.0
    %95 = vmatpush.msra.mxu0 0.0
    %96 = vmatpush.msra.mxu0 0.0
    %97 = vmatpush.msra.mxu0 0.0
    %98 = vmatpush.msra.mxu0 0.0
    %99 = vmatpush.msra.mxu0 0.0
    %100 = vmatpush.msra.mxu0 0.0
    %101 = vmatpush.msra.mxu0 0.0
    %102 = vmatpush.msra.mxu0 0.0
    %103 = vmatpush.msra.mxu0 0.0
    %104 = vmatpush.msra.mxu0 0.0
    %105 = vmatpush.msra.mxu0 %v41
    %106 = vmatpush.msra.mxu0 %v40
    %107 = vmatmul.f32.gmra.mxu0 %v86
    %v108 = vpop.f32.mrf.mxu0
    %v109 = vadd.f32 0.0, %v108
    %110 = vmatmul.f32.gmra.mxu0 %v89
    %v111 = vpop.f32.mrf.mxu0
    %v112 = vadd.f32 0.0, %v111
    %113 = vdwg.mxu0
    %v115 = vsel %vm84, %v46, 0
    %v118 = vsel %vm84, %v47, 0
    %120 = vmatpush.msra.mxu0 0.0
    %121 = vmatpush.msra.mxu0 0.0
    %122 = vmatpush.msra.mxu0 0.0
    %123 = vmatpush.msra.mxu0 0.0
    %124 = vmatpush.msra.mxu0 0.0
    %125 = vmatpush.msra.mxu0 0.0
    %126 = vmatpush.msra.mxu0 0.0
    %127 = vmatpush.msra.mxu0 0.0
    %128 = vmatpush.msra.mxu0 0.0
    %129 = vmatpush.msra.mxu0 0.0
    %130 = vmatpush.msra.mxu0 0.0
    %131 = vmatpush.msra.mxu0 0.0
    %132 = vmatpush.msra.mxu0 0.0
    %133 = vmatpush.msra.mxu0 0.0
    %134 = vmatpush.msra.mxu0 %v43
    %135 = vmatpush.msra.mxu0 %v42
    %136 = vmatmul.f32.gmra.mxu0 %v115
    %v137 = vpop.f32.mrf.mxu0
    %v138 = vadd.f32 0.0, %v137
    %139 = vmatmul.f32.gmra.mxu0 %v118
    %v140 = vpop.f32.mrf.mxu0
    %v141 = vadd.f32 0.0, %v140
    %142 = vdwg.mxu0
    %vm143 = vcmask 64512
    %v145 = vsel %vm143, %v109, 0
    %v148 = vsel %vm143, %v112, 0
    %150 = vmatpush.msra.mxu0 0.0
    %151 = vmatpush.msra.mxu0 0.0
    %152 = vmatpush.msra.mxu0 0.0
    %153 = vmatpush.msra.mxu0 0.0
    %154 = vmatpush.msra.mxu0 0.0
    %155 = vmatpush.msra.mxu0 0.0
    %156 = vmatpush.msra.mxu0 0.0
    %157 = vmatpush.msra.mxu0 0.0
    %158 = vmatpush.msra.mxu0 0.0
    %159 = vmatpush.msra.mxu0 0.0
    %160 = vmatpush.msra.mxu0 0.0
    %161 = vmatpush.msra.mxu0 0.0
    %162 = vmatpush.msra.mxu0 0.0
    %163 = vmatpush.msra.mxu0 0.0
    %164 = vmatpush.msra.mxu0 0.0
    %165 = vmatpush.msra.mxu0 %v48
    %166 = vmatmul.f32.gmra.mxu0 %v145
    %v167 = vpop.f32.mrf.mxu0
    %v168 = vadd.f32 0.0, %v167
    %169 = vmatmul.f32.gmra.mxu0 %v148
    %v170 = vpop.f32.mrf.mxu0
    %v171 = vadd.f32 0.0, %v170
    %172 = vdwg.mxu0
    %v174 = vsel %vm143, %v138, 0
    %v177 = vsel %vm143, %v141, 0
    %179 = vmatpush.msra.mxu0 0.0
    %180 = vmatpush.msra.mxu0 0.0
    %181 = vmatpush.msra.mxu0 0.0
    %182 = vmatpush.msra.mxu0 0.0
    %183 = vmatpush.msra.mxu0 0.0
    %184 = vmatpush.msra.mxu0 0.0
    %185 = vmatpush.msra.mxu0 0.0
    %186 = vmatpush.msra.mxu0 0.0
    %187 = vmatpush.msra.mxu0 0.0
    %188 = vmatpush.msra.mxu0 0.0
    %189 = vmatpush.msra.mxu0 0.0
    %190 = vmatpush.msra.mxu0 0.0
    %191 = vmatpush.msra.mxu0 0.0
    %192 = vmatpush.msra.mxu0 0.0
    %193 = vmatpush.msra.mxu0 0.0
    %194 = vmatpush.msra.mxu0 %v49
    %195 = vmatmul.f32.gmra.mxu0 %v174
    %v196 = vpop.f32.mrf.mxu0
    %v197 = vadd.f32 0.0, %v196
    %198 = vmatmul.f32.gmra.mxu0 %v177
    %v199 = vpop.f32.mrf.mxu0
    %v200 = vadd.f32 0.0, %v199
    %201 = vdwg.mxu0
    %v202 = vmax.f32 %v168, 0.0
    %v203 = vmax.f32 %v171, 0.0
    %v204 = vmax.f32 %v197, 0.0
    %v205 = vmax.f32 %v200, 0.0
    %v207 = vperm.slane %v82, 0
    %v209 = vadd.f32 %v202, %v207
    %v210 = vadd.f32 %v203, %v207
    %v211 = vadd.f32 %v204, %v207
    %v212 = vadd.f32 %v205, %v207
    %213 = vmatpush.msra.mxu0 %v65
    %214 = vmatpush.msra.mxu0 %v64
    %215 = vmatpush.msra.mxu0 %v63
    %216 = vmatpush.msra.mxu0 %v62
    %217 = vmatpush.msra.mxu0 %v61
    %218 = vmatpush.msra.mxu0 %v60
    %219 = vmatpush.msra.mxu0 %v59
    %220 = vmatpush.msra.mxu0 %v58
    %221 = vmatpush.msra.mxu0 %v57
    %222 = vmatpush.msra.mxu0 %v56
    %223 = vmatpush.msra.mxu0 %v55
    %224 = vmatpush.msra.mxu0 %v54
    %225 = vmatpush.msra.mxu0 %v53
    %226 = vmatpush.msra.mxu0 %v52
    %227 = vmatpush.msra.mxu0 %v51
    %228 = vmatpush.msra.mxu0 %v50
    %229 = vmatmul.f32.gmra.mxu0 %v209
    %v230 = vpop.f32.mrf.mxu0
    %v231 = vadd.f32 0.0, %v230
    %232 = vmatmul.f32.gmra.mxu0 %v210
    %v233 = vpop.f32.mrf.mxu0
    %v234 = vadd.f32 0.0, %v233
    %235 = vdwg.mxu0
    %236 = vmatpush.msra.mxu0 %v81
    %237 = vmatpush.msra.mxu0 %v80
    %238 = vmatpush.msra.mxu0 %v79
    %239 = vmatpush.msra.mxu0 %v78
    %240 = vmatpush.msra.mxu0 %v77
    %241 = vmatpush.msra.mxu0 %v76
    %242 = vmatpush.msra.mxu0 %v75
    %243 = vmatpush.msra.mxu0 %v74
    %244 = vmatpush.msra.mxu0 %v73
    %245 = vmatpush.msra.mxu0 %v72
    %246 = vmatpush.msra.mxu0 %v71
    %247 = vmatpush.msra.mxu0 %v70
    %248 = vmatpush.msra.mxu0 %v69
    %249 = vmatpush.msra.mxu0 %v68
    %250 = vmatpush.msra.mxu0 %v67
    %251 = vmatpush.msra.mxu0 %v66
    %252 = vmatmul.f32.gmra.mxu0 %v211
    %v253 = vpop.f32.mrf.mxu0
    %v254 = vadd.f32 0.0, %v253
    %255 = vmatmul.f32.gmra.mxu0 %v212
    %v256 = vpop.f32.mrf.mxu0
    %v257 = vadd.f32 0.0, %v256
    %258 = vdwg.mxu0
    %259 = vmatpush.msra.mxu0 0.0
    %260 = vmatpush.msra.mxu0 0.0
    %261 = vmatpush.msra.mxu0 0.0
    %262 = vmatpush.msra.mxu0 0.0
    %263 = vmatpush.msra.mxu0 0.0
    %264 = vmatpush.msra.mxu0 0.0
    %265 = vmatpush.msra.mxu0 0.0
    %266 = vmatpush.msra.mxu0 0.0
    %267 = vmatpush.msra.mxu0 0.0
    %268 = vmatpush.msra.mxu0 0.0
    %269 = vmatpush.msra.mxu0 0.0
    %270 = vmatpush.msra.mxu0 0.0
    %271 = vmatpush.msra.mxu0 0.0
    %272 = vmatpush.msra.mxu0 0.0
    %273 = vmatpush.msra.mxu0 %v234
    %274 = vmatpush.msra.mxu0 %v231
    %275 = vmatmul.f32.gmra.mxu0 %v86
    %v276 = vpop.f32.mrf.mxu0
    %v277 = vadd.f32 0.0, %v276
    %278 = vmatmul.f32.gmra.mxu0 %v89
    %v279 = vpop.f32.mrf.mxu0
    %v280 = vadd.f32 0.0, %v279
    %281 = vdwg.mxu0
    %282 = vmatpush.msra.mxu0 0.0
    %283 = vmatpush.msra.mxu0 0.0
    %284 = vmatpush.msra.mxu0 0.0
    %285 = vmatpush.msra.mxu0 0.0
    %286 = vmatpush.msra.mxu0 0.0
    %287 = vmatpush.msra.mxu0 0.0
    %288 = vmatpush.msra.mxu0 0.0
    %289 = vmatpush.msra.mxu0 0.0
    %290 = vmatpush.msra.mxu0 0.0
    %291 = vmatpush.msra.mxu0 0.0
    %292 = vmatpush.msra.mxu0 0.0
    %293 = vmatpush.msra.mxu0 0.0
    %294 = vmatpush.msra.mxu0 0.0
    %295 = vmatpush.msra.mxu0 0.0
    %296 = vmatpush.msra.mxu0 %v257
    %297 = vmatpush.msra.mxu0 %v254
    %298 = vmatmul.f32.gmra.mxu0 %v115
    %v299 = vpop.f32.mrf.mxu0
    %v300 = vadd.f32 0.0, %v299
    %301 = vmatmul.f32.gmra.mxu0 %v118
    %v302 = vpop.f32.mrf.mxu0
    %v303 = vadd.f32 0.0, %v302
    %304 = vdwg.mxu0
    %v305 = vmax.f32 %v277, 0.0
    %v306 = vmax.f32 %v280, 0.0
    %v307 = vmax.f32 %v300, 0.0
    %v308 = vmax.f32 %v303, 0.0
    %v310 = vperm.slane %v83, 0
    %v312 = vadd.f32 %v305, %v310
    %v313 = vadd.f32 %v306, %v310
    %v314 = vadd.f32 %v307, %v310
    %v315 = vadd.f32 %v308, %v310
    %316 = vst [vmem:[#allocation5] sm:$0xff] %v312
    %317 = vst [vmem:[#allocation5 + $0x8] sm:$0xff] %v313
    %318 = vst [vmem:[#allocation5 + $0x10] sm:$0xff] %v314
    %319 = vst [vmem:[#allocation5 + $0x18] sm:$0xff] %v315
    // Predicated region
    $region30: #{tpu_custom_call.1} parent=1 // pred_check
      _
    $region31: #{tpu_custom_call.1} parent=1 // pred_check_branch
      %321 = sbr.rel (0) target = $region33
    $region32: #{tpu_custom_call.1} parent=1 // pred_region
      %323 = vsyncadd [#allocation4], 0
      %s324 = sshll.u32 [#allocation5], 4
      %s325 = int_to_ptr.vmem [resolvable:$true] %s324
      %s326 = sshll.u32 %s6, 4
      %s327 = int_to_ptr.hbm [resolvable:$true] %s326
      %332 = dma.vmem_to_hbm [thread:$0]  %s325, 512, %s327, [#allocation4], 128, 128, 8
    $region33: #{tpu_custom_call.1} parent=1 // pred_fallthru
      _
    // Predicated region
    $region34: #{tpu_custom_call.1} parent=1 // pred_check
      _
    $region35: #{tpu_custom_call.1} parent=1 // pred_check_branch
      %334 = sbr.rel (0) target = $region37
    $region36: #{tpu_custom_call.1} parent=1 // pred_region
      %336 = dma.done [#allocation4], 512
    $region37: #{tpu_custom_call.1} parent=1 // pred_fallthru
      _
    %337 = vsyncpa [#allocation3], 1
    %338 = vsyncpa [#allocation4], 1

</llo_original>
